<compile_context>
chip_gen: v7x
topology: tpu7x:2x2x1
jax: 0.10.0
libtpu: 0.0.40
codegen_flags: <defaults>
</compile_context>

<pallas_src>
import math
import functools

import jax
import jax.numpy as jnp
from jax.experimental import pallas as pl
from jax.experimental.pallas import tpu as pltpu


def _round_up(a, b):
    return (a + b - 1) // b * b


def _cdiv(a, b):
    return (a + b - 1) // b


def _sublane_pack(dtype):
    # Native sublane packing: 8 for 4-byte, 16 for 2-byte, 32 for 1-byte dtypes.
    return max(8, 32 // jnp.dtype(dtype).itemsize)


def _fit_tile(size, tile_max, align):
    """Largest-useful tile <= ~tile_max that minimizes padding of `size`."""
    size_a = _round_up(max(size, 1), align)
    if size_a <= tile_max:
        return size_a
    nblocks = _cdiv(size_a, tile_max)
    return _round_up(_cdiv(size_a, nblocks), align)


def _device_defaults():
    kind = ""
    try:
        kind = jax.devices()[0].device_kind.lower()
    except Exception:
        pass
    if "v7" in kind:
        # 64 MiB physical VMEM, 3.2 TB/s HBM: 512x1024 is already compute-bound.
        return dict(tm=512, tn=1024, tk=512,
                    vmem_limit_bytes=48 * 1024 * 1024, is_v7=True)
    if "v6" in kind:
        # Tightest compute/HBM ratio: needs big tiles to reach the MXU roofline.
        return dict(tm=1024, tn=2048, tk=256,
                    vmem_limit_bytes=96 * 1024 * 1024, is_v7=False)
    if "v5" in kind:
        # v5e scoped-VMEM default is only 16 MiB; raise it explicitly.
        return dict(tm=512, tn=512, tk=512,
                    vmem_limit_bytes=96 * 1024 * 1024, is_v7=False)
    return dict(tm=256, tn=512, tk=512, vmem_limit_bytes=None, is_v7=False)


def _linear_kernel(*refs, has_bias, acc_in_out):
    # acc_in_out=True  (f32 output): x_ref, w_ref, [b_ref], o_ref           -- acc == o_ref
    # acc_in_out=False (narrow out): x_ref, w_ref, [b_ref], o_ref, acc_ref  -- f32 scratch
    if acc_in_out:
        if has_bias:
            x_ref, w_ref, b_ref, o_ref = refs
        else:
            x_ref, w_ref, o_ref = refs
            b_ref = None
        acc_ref = o_ref
    else:
        if has_bias:
            x_ref, w_ref, b_ref, o_ref, acc_ref = refs
        else:
            x_ref, w_ref, o_ref, acc_ref = refs
            b_ref = None

    k = pl.program_id(2)

    @pl.when(k == 0)
    def _():
        # Fold the bias into the accumulator init (no epilogue add).
        if has_bias:
            acc_ref[...] = jnp.broadcast_to(
                b_ref[...].astype(acc_ref.dtype), acc_ref.shape)
        else:
            acc_ref[...] = jnp.zeros_like(acc_ref)

    # Weight is pre-transposed to (K, N): plain (1,0) contraction on the MXU.
    acc_ref[...] += jnp.dot(x_ref[...], w_ref[...],
                            preferred_element_type=jnp.float32)

    if not acc_in_out:
        @pl.when(k == pl.num_programs(2) - 1)
        def _():
            o_ref[...] = acc_ref[...].astype(o_ref.dtype)


class PallasLinear:
    """F.linear(x, W, b) with W transposed/padded ONCE, outside the hot path."""

    def __init__(self, weight, bias=None, *, compute_dtype=None,
                 tm=None, tn=None, tk=None, vmem_limit_bytes=None,
                 weight_buffers=2):
        weight = jnp.asarray(weight)
        if compute_dtype is not None:
            weight = weight.astype(compute_dtype)   # cast once, offline
        N, K = weight.shape

        d = _device_defaults()
        tm = d["tm"] if tm is None else tm
        tn = d["tn"] if tn is None else tn
        tk = d["tk"] if tk is None else tk
        self.vmem_limit_bytes = (d["vmem_limit_bytes"]
                                 if vmem_limit_bytes is None else vmem_limit_bytes)
        self.weight_buffers = weight_buffers
        self.tm_max = tm

        # ---- N tiling (fixed at prep; weight padded once; lane-dense output).
        n_aligned = _round_up(N, 128)
        self.tn = _fit_tile(N, tn, 128)
        gn = _cdiv(n_aligned, self.tn)
        if d["is_v7"] and gn == 1 and n_aligned >= 256:
            # Ensure both v7x TensorCores get an N block on small-M (decode) calls.
            self.tn = _round_up(_cdiv(n_aligned, 2), 128)
            gn = _cdiv(n_aligned, self.tn)
        self.gn = gn
        Np = self.tn * gn

        # ---- K tiling (reduction axis; zero-padding keeps accumulation exact).
        self.tk = _fit_tile(K, tk, 128)
        self.gk = _cdiv(_round_up(K, 128), self.tk)
        Kp = self.tk * self.gk

        self.N, self.K, self.Np, self.Kp = N, K, Np, Kp

        # ---- One-time weight prep: (N, K) -> (K, N), padded to (Kp, Np).
        w_kn = weight.T
        if (Kp, Np) != (K, N):
            w_kn = jnp.pad(w_kn, ((0, Kp - K), (0, Np - N)))
        self.w_kn = w_kn

        if bias is not None:
            b = jnp.asarray(bias, jnp.float32)
            if Np != N:
                b = jnp.pad(b, (0, Np - N))
            self.bias = b.reshape(1, Np)
        else:
            self.bias = None

    def __call__(self, x):
        N, K, Np, Kp = self.N, self.K, self.Np, self.Kp
        tn, tk, gn, gk = self.tn, self.tk, self.gn, self.gk
        assert x.shape[-1] == K, f"expected last dim {K}, got {x.shape}"

        orig_lead = x.shape[:-1]
        out_dtype = x.dtype
        x2d = x.reshape(-1, K)
        if x2d.dtype != self.w_kn.dtype:
            x2d = x2d.astype(self.w_kn.dtype)
        M = x2d.shape[0]

        # Only K needs materialized zero-padding; ragged M is handled by the
        # grid (out-of-bounds rows only feed masked/discarded output rows).
        if Kp != K:
            x2d = jnp.pad(x2d, ((0, 0), (0, Kp - K)))

        pack = max(_sublane_pack(x2d.dtype), _sublane_pack(out_dtype))
        tm = _fit_tile(M, self.tm_max, pack)
        gm = _cdiv(M, tm)

        acc_in_out = jnp.dtype(out_dtype) == jnp.dtype(jnp.float32)
        has_bias = self.bias is not None

        x_spec = pl.BlockSpec((tm, tk), lambda i, j, k: (i, k))
        if self.weight_buffers != 2:
            # Extra buffering on the largest streamed operand (opt-in knob).
            w_spec = pl.BlockSpec((tk, tn), lambda i, j, k: (k, j),
                                  pipeline_mode=pl.Buffered(self.weight_buffers))
        else:
            w_spec = pl.BlockSpec((tk, tn), lambda i, j, k: (k, j))
        in_specs = [x_spec, w_spec]
        operands = [x2d, self.w_kn]
        if has_bias:
            in_specs.append(pl.BlockSpec((1, tn), lambda i, j, k: (0, j)))
            operands.append(self.bias)

        scratch_shapes = [] if acc_in_out else [pltpu.VMEM((tm, tn), jnp.float32)]

        x_item = jnp.dtype(x2d.dtype).itemsize
        w_item = jnp.dtype(self.w_kn.dtype).itemsize
        o_item = jnp.dtype(out_dtype).itemsize
        cost = pl.CostEstimate(
            flops=2 * M * Np * Kp,
            transcendentals=0,
            bytes_accessed=(M * Kp * x_item * gn        # x streamed once per N block
                            + Kp * Np * w_item * gm     # W streamed once per M block
                            + M * Np * o_item           # output written once
                            + (Np * 4 * gm if has_bias else 0)),
        )

        out = pl.pallas_call(
            functools.partial(_linear_kernel, has_bias=has_bias,
                              acc_in_out=acc_in_out),
            out_shape=jax.ShapeDtypeStruct((M, Np), out_dtype),
            grid_spec=pltpu.PrefetchScalarGridSpec(
                num_scalar_prefetch=0,
                grid=(gm, gn, gk),
                in_specs=in_specs,
                out_specs=pl.BlockSpec((tm, tn), lambda i, j, k: (i, j)),
                scratch_shapes=scratch_shapes,
            ),
            compiler_params=pltpu.CompilerParams(
                dimension_semantics=("parallel", "parallel", "arbitrary"),
                vmem_limit_bytes=self.vmem_limit_bytes),
            cost_estimate=cost,
        )(*operands)

        if Np != N:
            out = out[:, :N]
        return out.reshape(*orig_lead, N)


def linear_pallas(x, weight, bias=None, **kwargs):
    """One-shot convenience wrapper. NOTE: prepares (transposes/pads) the weight
    on every call; real models should construct PallasLinear once and reuse it."""
    return PallasLinear(weight, bias, **kwargs)(x)


def init_linear_params(key, in_features, out_features, dtype=jnp.float32):
    """Mirror nn.Linear.reset_parameters(): kaiming_uniform_(a=sqrt(5)) on weight
    == U(-1/sqrt(fan_in), 1/sqrt(fan_in)); bias ~ U(-1/sqrt(fan_in), 1/sqrt(fan_in))."""
    kw, kb = jax.random.split(key)
    bound = 1.0 / math.sqrt(in_features)
    weight = jax.random.uniform(
        kw, (out_features, in_features), dtype, minval=-bound, maxval=bound)
    bias = jax.random.uniform(
        kb, (out_features,), dtype, minval=-bound, maxval=bound)
    return weight, bias


if __name__ == "__main__":
    key = jax.random.PRNGKey(0)
    k_x, k_p = jax.random.split(key)

    batch = 8
    in_features = 32
    out_features = 64

    x = jax.random.normal(k_x, (batch, in_features), jnp.float32)
    weight, bias = init_linear_params(k_p, in_features, out_features)

    # Module-style usage: weight transposed/padded once, reused per call.
    layer = PallasLinear(weight, bias)
    y = jax.block_until_ready(layer(x))
    y_ref = x @ weight.T + bias
    assert y.shape == (batch, out_features)
    assert jnp.allclose(y, y_ref, atol=1e-4, rtol=1e-4), \
        float(jnp.max(jnp.abs(y - y_ref)))

    # Functional path, no bias, leading batch dims (..., in_features).
    x3 = jax.random.normal(k_x, (2, 4, in_features), jnp.float32)
    y3 = jax.block_until_ready(linear_pallas(x3, weight, None))
    y3_ref = x3 @ weight.T
    assert y3.shape == (2, 4, out_features)
    assert jnp.allclose(y3, y3_ref, atol=1e-4, rtol=1e-4)

    print("KERNEL_OK")
</pallas_src>

<mosaic_0001>
module attributes {stable_mosaic.version = 11 : i64} {
  func.func @_linear_kernel(%arg0: i32, %arg1: i32, %arg2: i32, %arg3: memref<8x128xf32, #tpu.memory_space<vmem>>, %arg4: memref<128x128xf32, #tpu.memory_space<vmem>>, %arg5: memref<1x128xf32, #tpu.memory_space<vmem>>, %arg6: memref<8x128xf32, #tpu.memory_space<vmem>>) attributes {dimension_semantics = [#tpu.dimension_semantics<parallel>, #tpu.dimension_semantics<parallel>, #tpu.dimension_semantics<arbitrary>], iteration_bounds = array<i64: 1, 1, 1>, scalar_prefetch = 0 : i64, scratch_operands = 0 : i64, tpu.core_type = #tpu.core_type<tc>, window_params = [{transform_indices = @transform_0, window_bounds = array<i64: 8, 128>}, {transform_indices = @transform_1, window_bounds = array<i64: 128, 128>}, {transform_indices = @transform_2, window_bounds = array<i64: 1, 128>}, {transform_indices = @transform_3, window_bounds = array<i64: 8, 128>}]} {
    %c0_i32 = arith.constant 0 : i32
    %0 = arith.cmpi eq, %arg2, %c0_i32 : i32
    %1 = arith.extui %0 : i1 to i32
    %c0_i32_0 = arith.constant 0 : i32
    %2 = arith.cmpi ne, %1, %c0_i32_0 : i32
    scf.if %2 {
      %c0_8 = arith.constant 0 : index
      %c0_9 = arith.constant 0 : index
      %9 = vector.load %arg5[%c0_8, %c0_9] : memref<1x128xf32, #tpu.memory_space<vmem>>, vector<1x128xf32>
      %10 = vector.shape_cast %9 : vector<1x128xf32> to vector<1x128xf32>
      %11 = vector.broadcast %10 : vector<1x128xf32> to vector<8x128xf32>
      %c0_10 = arith.constant 0 : index
      %c0_11 = arith.constant 0 : index
      %12 = vector.load %arg6[%c0_10, %c0_11] : memref<8x128xf32, #tpu.memory_space<vmem>>, vector<8x128xf32>
      tpu.vector_store %arg6[%c0_10, %c0_11], %11 {strides = array<i32>} : memref<8x128xf32, #tpu.memory_space<vmem>>, vector<8x128xf32>,
    } else {
    }
    %c0 = arith.constant 0 : index
    %c0_1 = arith.constant 0 : index
    %3 = vector.load %arg6[%c0, %c0_1] : memref<8x128xf32, #tpu.memory_space<vmem>>, vector<8x128xf32>
    %c0_2 = arith.constant 0 : index
    %c0_3 = arith.constant 0 : index
    %4 = vector.load %arg3[%c0_2, %c0_3] : memref<8x128xf32, #tpu.memory_space<vmem>>, vector<8x128xf32>
    %c0_4 = arith.constant 0 : index
    %c0_5 = arith.constant 0 : index
    %5 = vector.load %arg4[%c0_4, %c0_5] : memref<128x128xf32, #tpu.memory_space<vmem>>, vector<128x128xf32>
    %cst = arith.constant dense<0.000000e+00> : vector<8x128xf32>
    %6 = tpu.matmul %4, %5, %cst {dimension_numbers = #tpu.dot_dimension_numbers<[1], [0], [0], [1], [0, 0, 1, 1], [], []>} : vector<8x128xf32>, vector<128x128xf32>, vector<8x128xf32> -> vector<8x128xf32>
    %7 = arith.addf %3, %6 : vector<8x128xf32>
    %c0_6 = arith.constant 0 : index
    %c0_7 = arith.constant 0 : index
    %8 = vector.load %arg6[%c0_6, %c0_7] : memref<8x128xf32, #tpu.memory_space<vmem>>, vector<8x128xf32>
    tpu.vector_store %arg6[%c0_6, %c0_7], %7 {strides = array<i32>} : memref<8x128xf32, #tpu.memory_space<vmem>>, vector<8x128xf32>,
    return
  }
  func.func @transform_0(%arg0: i32, %arg1: i32, %arg2: i32) -> (i32, i32) {
    %c0_i32 = arith.constant 0 : i32
    return %arg0, %arg2 : i32, i32
  }
  func.func @transform_1(%arg0: i32, %arg1: i32, %arg2: i32) -> (i32, i32) {
    %c0_i32 = arith.constant 0 : i32
    return %arg2, %arg1 : i32, i32
  }
  func.func @transform_2(%arg0: i32, %arg1: i32, %arg2: i32) -> (i32, i32) {
    %c0_i32 = arith.constant 0 : i32
    %c0_i32_0 = arith.constant 0 : i32
    return %c0_i32, %arg1 : i32, i32
  }
  func.func @transform_3(%arg0: i32, %arg1: i32, %arg2: i32) -> (i32, i32) {
    %c0_i32 = arith.constant 0 : i32
    return %arg0, %arg1 : i32, i32
  }
}

</mosaic_0001>

<llo_original>
// kernel: tpu_custom_call.1
$region0: #{tpu_custom_call.1}
  #allocation0 [shape = 'u32[]', space=smem, size = 0x4, offset = 0x4, fixed_abs, tag = 'smem constant byte address 0x4 - core index']
  #allocation1 [shape = 'u32[144,128]{1,0:T(1,128)}', space=vmem, size = 0x12000, scoped, tag = 'internal scratch']
  %s0 = inlined_call_operand.hbm [shape: f32[8,128], index: 0, kind: input, shape index: {}]
  %s1 = inlined_call_operand.hbm [shape: f32[128,128], index: 1, kind: input, shape index: {}]
  %s2 = inlined_call_operand.vmem [shape: f32[1,128], index: 2, kind: input, shape index: {}]
  %s3 = inlined_call_operand.hbm [shape: f32[8,128], index: 3, kind: output, shape index: {}]
  %s4 = sld [smem:[#allocation0]]
  $region34: #{tpu_custom_call.1} parent=0
    _
  %s6 = ssub.s32 1, %s4
  %s7 = scalar_select 0, %s6, %s4
  $region1: #{tpu_custom_call.1} parent=0
    #allocation2 [shape = 'u8[4096]{0}', space=vmem, size = 0x1000, scoped, tag = 'input window, operand 0, single buffered']
    #allocation3 [shape = 's32[1]{0}', space=sflag, size = 0x4, scoped, tag = 'scoped memory for tpu_custom_call.1']
    #allocation4 [shape = 's32[1]{0}', space=sflag, size = 0x4, scoped, tag = 'scoped memory for tpu_custom_call.1']
    #allocation5 [shape = 'u8[65536]{0}', space=vmem, size = 0x10000, scoped, tag = 'input window, operand 1, single buffered']
    #allocation6 [shape = 's32[1]{0}', space=sflag, size = 0x4, scoped, tag = 'scoped memory for tpu_custom_call.1']
    #allocation7 [shape = 'u8[4096]{0}', space=vmem, size = 0x1000, scoped, tag = 'output window, operand 0, single buffered']
    %8 = vsyncpa [#allocation3], 0
    %9 = vsyncpa [#allocation6], 0
    %10 = vsyncpa [#allocation4], 0
    // Predicated region
    $region2: #{tpu_custom_call.1} parent=1 // pred_check
      _
    $region3: #{tpu_custom_call.1} parent=1 // pred_check_branch
      %12 = sbr.rel (0) target = $region5
    $region4: #{tpu_custom_call.1} parent=1 // pred_region
      %s14 = ssub.s32 128, 128
      %15 = vsyncadd [#allocation3], %s14
      %s17 = sshll.u32 [#allocation2], 4
      %s18 = int_to_ptr.vmem [resolvable:$true] %s17
      %20 = dma.hbm_to_vmem [thread:$0]  %s0, 128, %s18, [#allocation3]
    $region5: #{tpu_custom_call.1} parent=1 // pred_fallthru
      _
    // Predicated region
    $region6: #{tpu_custom_call.1} parent=1 // pred_check
      _
    $region7: #{tpu_custom_call.1} parent=1 // pred_check_branch
      %22 = sbr.rel (0) target = $region9
    $region8: #{tpu_custom_call.1} parent=1 // pred_region
      %s24 = ssub.s32 2048, 2048
      %25 = vsyncadd [#allocation6], %s24
      %s26 = sshll.u32 [#allocation5], 4
      %s27 = int_to_ptr.vmem [resolvable:$true] %s26
      %32 = dma.hbm_to_vmem [thread:$0]  %s1, 2048, %s27, [#allocation6], 128, 128, 8
    $region9: #{tpu_custom_call.1} parent=1 // pred_fallthru
      _
    // Predicated region
    $region10: #{tpu_custom_call.1} parent=1 // pred_check
      _
    $region11: #{tpu_custom_call.1} parent=1 // pred_check_branch
      %34 = sbr.rel (0) target = $region13
    $region12: #{tpu_custom_call.1} parent=1 // pred_region
      _
    $region13: #{tpu_custom_call.1} parent=1 // pred_fallthru
      _
    // Predicated region
    $region14: #{tpu_custom_call.1} parent=1 // pred_check
      _
    $region15: #{tpu_custom_call.1} parent=1 // pred_check_branch
      %36 = sbr.rel (0) target = $region17
    $region16: #{tpu_custom_call.1} parent=1 // pred_region
      %37 = dma.done [#allocation3], 128
    $region17: #{tpu_custom_call.1} parent=1 // pred_fallthru
      _
    // Predicated region
    $region18: #{tpu_custom_call.1} parent=1 // pred_check
      _
    $region19: #{tpu_custom_call.1} parent=1 // pred_check_branch
      %39 = sbr.rel (0) target = $region21
    $region20: #{tpu_custom_call.1} parent=1 // pred_region
      %40 = dma.done [#allocation6], 2048
    $region21: #{tpu_custom_call.1} parent=1 // pred_fallthru
      _
    %p41 = scmp.eq.s32.totalorder 0, 0
    // Predicated region
    $region22: #{tpu_custom_call.1} parent=1 // pred_check
      %p42 = pneg %p41
    $region23: #{tpu_custom_call.1} parent=1 // pred_check_branch
      %44 = sbr.rel (%p42) target = $region25
    $region24: #{tpu_custom_call.1} parent=1 // pred_region
      %v45 = vld [vmem:[%s2] sm:$0x1]
      %v47 = vlaneseq
      %v48 = vshrl.u32 %v47, 7
      %v49 = vsub.s32 0, %v48
      %v50 = vrot.slane %v45, %v49
      %52 = vst [vmem:[#allocation7] sm:$0xff] %v50
    $region25: #{tpu_custom_call.1} parent=1 // pred_fallthru
      _
    %v53 = vld [vmem:[#allocation7] sm:$0xff]
    %v54 = vld [vmem:[#allocation2] sm:$0xff]
    %v55 = vld [vmem:[#allocation5] sm:$0xff]
    %v56 = vld [vmem:[#allocation5 + $0x8] sm:$0xff]
    %v57 = vld [vmem:[#allocation5 + $0x10] sm:$0xff]
    %v58 = vld [vmem:[#allocation5 + $0x18] sm:$0xff]
    %v59 = vld [vmem:[#allocation5 + $0x20] sm:$0xff]
    %v60 = vld [vmem:[#allocation5 + $0x28] sm:$0xff]
    %v61 = vld [vmem:[#allocation5 + $0x30] sm:$0xff]
    %v62 = vld [vmem:[#allocation5 + $0x38] sm:$0xff]
    %v63 = vld [vmem:[#allocation5 + $0x40] sm:$0xff]
    %v64 = vld [vmem:[#allocation5 + $0x48] sm:$0xff]
    %v65 = vld [vmem:[#allocation5 + $0x50] sm:$0xff]
    %v66 = vld [vmem:[#allocation5 + $0x58] sm:$0xff]
    %v67 = vld [vmem:[#allocation5 + $0x60] sm:$0xff]
    %v68 = vld [vmem:[#allocation5 + $0x68] sm:$0xff]
    %v69 = vld [vmem:[#allocation5 + $0x70] sm:$0xff]
    %v70 = vld [vmem:[#allocation5 + $0x78] sm:$0xff]
    %71 = vmatprep.subr.mxu0 0.0
    %72 = vmatpush1.msra.mxu0 %v55
    %73 = vmatprep.subr.mxu0 0.0
    %74 = vmatpush1.msra.mxu0 %v56
    %75 = vmatprep.subr.mxu0 0.0
    %76 = vmatpush1.msra.mxu0 %v57
    %77 = vmatprep.subr.mxu0 0.0
    %78 = vmatpush1.msra.mxu0 %v58
    %79 = vmatprep.subr.mxu0 0.0
    %80 = vmatpush1.msra.mxu0 %v59
    %81 = vmatprep.subr.mxu0 0.0
    %82 = vmatpush1.msra.mxu0 %v60
    %83 = vmatprep.subr.mxu0 0.0
    %84 = vmatpush1.msra.mxu0 %v61
    %85 = vmatprep.subr.mxu0 0.0
    %86 = vmatpush1.msra.mxu0 %v62
    %87 = vmatprep.subr.mxu0 0.0
    %88 = vmatpush1.msra.mxu0 %v63
    %89 = vmatprep.subr.mxu0 0.0
    %90 = vmatpush1.msra.mxu0 %v64
    %91 = vmatprep.subr.mxu0 0.0
    %92 = vmatpush1.msra.mxu0 %v65
    %93 = vmatprep.subr.mxu0 0.0
    %94 = vmatpush1.msra.mxu0 %v66
    %95 = vmatprep.subr.mxu0 0.0
    %96 = vmatpush1.msra.mxu0 %v67
    %97 = vmatprep.subr.mxu0 0.0
    %98 = vmatpush1.msra.mxu0 %v68
    %99 = vmatprep.subr.mxu0 0.0
    %100 = vmatpush1.msra.mxu0 %v69
    %101 = vmatprep.subr.mxu0 0.0
    %102 = vmatpush1.msra.mxu0 %v70
    %103 = vmatprep.subr.mxu0 0.0
    %104 = vmatpush1.msra.mxu0 0.0
    %105 = vmatprep.subr.mxu0 0.0
    %106 = vmatpush1.msra.mxu0 0.0
    %107 = vmatprep.subr.mxu0 0.0
    %108 = vmatpush1.msra.mxu0 0.0
    %109 = vmatprep.subr.mxu0 0.0
    %110 = vmatpush1.msra.mxu0 0.0
    %111 = vmatprep.subr.mxu0 0.0
    %112 = vmatpush1.msra.mxu0 0.0
    %113 = vmatprep.subr.mxu0 0.0
    %114 = vmatpush1.msra.mxu0 0.0
    %115 = vmatprep.subr.mxu0 0.0
    %116 = vmatpush1.msra.mxu0 0.0
    %117 = vmatprep.subr.mxu0 0.0
    %118 = vmatpush1.msra.mxu0 0.0
    %119 = vmatprep.subr.mxu0 0.0
    %120 = vmatpush1.msra.mxu0 0.0
    %121 = vmatprep.subr.mxu0 0.0
    %122 = vmatpush1.msra.mxu0 0.0
    %123 = vmatprep.subr.mxu0 0.0
    %124 = vmatpush1.msra.mxu0 0.0
    %125 = vmatprep.subr.mxu0 0.0
    %126 = vmatpush1.msra.mxu0 0.0
    %127 = vmatprep.subr.mxu0 0.0
    %128 = vmatpush1.msra.mxu0 0.0
    %129 = vmatprep.subr.mxu0 0.0
    %130 = vmatpush1.msra.mxu0 0.0
    %131 = vmatprep.subr.mxu0 0.0
    %132 = vmatpush1.msra.mxu0 0.0
    %133 = vmatprep.subr.mxu0 0.0
    %134 = vmatpush1.msra.mxu0 0.0
    %135 = vmatprep.mubr.f32.mxu0 0.0
    %136 = vmatmul.mubr.f32.gmra.mrb[0].mxu0 %v54
    %v137 = vpop.f32.mrb[0].mxu0
    %v138 = vadd.f32 0.0, %v137
    %v139 = vpop.f32.mrb[0].mxu0
    %140 = vdwg.mxu0
    %v141 = vadd.f32 %v53, %v138
    %142 = vst [vmem:[#allocation7] sm:$0xff] %v141
    // Predicated region
    $region26: #{tpu_custom_call.1} parent=1 // pred_check
      _
    $region27: #{tpu_custom_call.1} parent=1 // pred_check_branch
      %144 = sbr.rel (0) target = $region29
    $region28: #{tpu_custom_call.1} parent=1 // pred_region
      %s146 = ssub.s32 128, 128
      %147 = vsyncadd [#allocation4], %s146
      %s149 = sshll.u32 [#allocation7], 4
      %s150 = int_to_ptr.vmem [resolvable:$true] %s149
      %152 = dma.vmem_to_hbm [thread:$0]  %s150, 128, %s3, [#allocation4]
    $region29: #{tpu_custom_call.1} parent=1 // pred_fallthru
      _
    // Predicated region
    $region30: #{tpu_custom_call.1} parent=1 // pred_check
      _
    $region31: #{tpu_custom_call.1} parent=1 // pred_check_branch
      %154 = sbr.rel (0) target = $region33
    $region32: #{tpu_custom_call.1} parent=1 // pred_region
      %155 = dma.done [#allocation4], 128
    $region33: #{tpu_custom_call.1} parent=1 // pred_fallthru
      _
    %156 = vsyncpa [#allocation3], 1
    %157 = vsyncpa [#allocation6], 1
    %158 = vsyncpa [#allocation4], 1

</llo_original>
